<compile_context>
chip_gen: v5e
topology: v5e:2x2
jax: 0.10.0
libtpu: 0.0.40
codegen_flags: <defaults>
</compile_context>

<pallas_src>
import functools

import jax
import jax.numpy as jnp
from jax.experimental import pallas as pl
from jax.experimental.pallas import tpu as pltpu


def _round_up(x, m):
    return ((x + m - 1) // m) * m


def _pooler_end_logits_kernel(*refs, eps, ss_projected, has_mask):
    refs = list(refs)
    hs_ref = refs.pop(0)                                  # (tm, H) bf16
    ss_ref = refs.pop(0)                                  # (tm, H) bf16 or (1, H) f32
    w0h_ref = refs.pop(0)                                 # (H, H) bf16
    w0s_ref = None if ss_projected else refs.pop(0)       # (H, H) bf16
    b0_ref = refs.pop(0)                                  # (1, H) f32
    scale_ref = refs.pop(0)                               # (1, H) f32   gamma * w1
    const_ref = refs.pop(0)                               # (1,) f32 in SMEM  beta.w1 + b1
    pm_ref = refs.pop(0) if has_mask else None            # (tm, 1) f32
    out_ref = refs.pop(0)                                 # (tm, 1) f32

    # dense_0 applied to cat([hidden, start], -1), split into two matmuls.
    x = jnp.dot(hs_ref[...], w0h_ref[...], preferred_element_type=jnp.float32)
    if ss_projected:
        # start rows already projected through W0_s in the wrapper: broadcast-add.
        x = x + ss_ref[...]
    else:
        x = x + jnp.dot(ss_ref[...], w0s_ref[...],
                        preferred_element_type=jnp.float32)
    x = jnp.tanh(x + b0_ref[...])

    # LayerNorm (affine folded into scale/const below).
    mean = jnp.mean(x, axis=-1, keepdims=True)
    var = jnp.mean(jnp.square(x - mean), axis=-1, keepdims=True)
    xhat = (x - mean) * jax.lax.rsqrt(var + eps)

    # dense_1 folded with the LN affine: logits = sum(xhat * (gamma*w1)) + (beta.w1 + b1)
    logits = jnp.sum(xhat * scale_ref[...], axis=-1, keepdims=True) + const_ref[0]

    if has_mask:
        # Spec convention: x * p_mask - 1e30 * (1 - p_mask)  (f32 params path).
        pm = pm_ref[...]
        logits = logits * pm - 1e30 * (1.0 - pm)

    out_ref[...] = logits


def prepare_params(raw):
    """Pre-split / pre-transpose the PyTorch-layout parameters once."""
    H = raw["dense_0_b"].shape[0]
    w0 = raw["dense_0_w"]                                     # [H, 2H] (PyTorch Linear)
    w0_h = jnp.asarray(w0[:, :H].T, jnp.bfloat16)             # [H, H]
    w0_s = jnp.asarray(w0[:, H:].T, jnp.bfloat16)             # [H, H]
    b0 = raw["dense_0_b"].reshape(1, H).astype(jnp.float32)
    gamma = raw["ln_gamma"].astype(jnp.float32)
    beta = raw["ln_beta"].astype(jnp.float32)
    w1 = raw["dense_1_w"].reshape(H).astype(jnp.float32)
    b1 = raw["dense_1_b"].reshape(()).astype(jnp.float32)
    scale = (gamma * w1).reshape(1, H)
    const = (jnp.dot(beta, w1) + b1).reshape(1)
    return {"w0_h": w0_h, "w0_s": w0_s, "b0": b0, "scale": scale, "const": const}


def pooler_end_logits(hidden_states, params, *, start_states=None,
                      start_positions=None, p_mask=None,
                      layer_norm_eps=1e-12, block_tokens=512):
    """JAX/Pallas equivalent of PoolerEndLogits.forward.

    hidden_states  : [B, S, H] float32
    params         : output of prepare_params()
    start_states   : [B, S, H] float32 or None
    start_positions: [B] int or None (takes precedence, as in the spec)
    p_mask         : [B, S] float32 or None
    returns        : [B, S] float32

    block_tokens: seq tile size. 256-512 fits v7x's 64 MiB VMEM with the
    default 48 MiB scoped limit; can be raised to 1024-2048 on v5e/v6e.
    """
    assert start_states is not None or start_positions is not None, (
        "One of start_states, start_positions should be not None")
    B, S, H = hidden_states.shape

    ss_projected = start_positions is not None
    has_mask = p_mask is not None

    # Token tiling (sublane-aligned), pad seq if needed.
    tm = _round_up(min(block_tokens, _round_up(S, 8)), 8)
    S_pad = _round_up(S, tm)
    grid = (B, S_pad // tm)

    hs = hidden_states.astype(jnp.bfloat16)
    if S_pad != S:
        hs = jnp.pad(hs, ((0, 0), (0, S_pad - S), (0, 0)))

    tok_spec = pl.BlockSpec((None, tm, H), lambda b, i: (b, i, 0))
    res_HH = pl.BlockSpec((H, H), lambda b, i: (0, 0))
    res_1H = pl.BlockSpec((1, H), lambda b, i: (0, 0))

    inputs = [hs]
    in_specs = [tok_spec]

    if ss_projected:
        # Gather the start row per batch and project it through W0_s once
        # (tiny [B,H]@[H,H] matmul) -- no [B,S,H] broadcast, half the MXU work.
        idx = jnp.broadcast_to(
            start_positions.astype(jnp.int32)[:, None, None], (B, 1, H))
        gathered = jnp.take_along_axis(hidden_states, idx, axis=-2)[:, 0, :]  # [B,H]
        ss_proj = jnp.dot(gathered.astype(jnp.bfloat16), params["w0_s"],
                          preferred_element_type=jnp.float32)                 # [B,H] f32
        inputs.append(ss_proj.reshape(B, 1, H))
        in_specs.append(pl.BlockSpec((None, 1, H), lambda b, i: (b, 0, 0)))
    else:
        ss = start_states.astype(jnp.bfloat16)
        if S_pad != S:
            ss = jnp.pad(ss, ((0, 0), (0, S_pad - S), (0, 0)))
        inputs.append(ss)
        in_specs.append(tok_spec)

    inputs.append(params["w0_h"]); in_specs.append(res_HH)
    if not ss_projected:
        inputs.append(params["w0_s"]); in_specs.append(res_HH)
    inputs.append(params["b0"]); in_specs.append(res_1H)
    inputs.append(params["scale"]); in_specs.append(res_1H)
    inputs.append(params["const"])
    in_specs.append(pl.BlockSpec(memory_space=pltpu.MemorySpace.SMEM))

    if has_mask:
        pm = p_mask.astype(jnp.float32).reshape(B, S, 1)
        if S_pad != S:
            pm = jnp.pad(pm, ((0, 0), (0, S_pad - S), (0, 0)))
        inputs.append(pm)
        in_specs.append(pl.BlockSpec((None, tm, 1), lambda b, i: (b, i, 0)))

    kernel = functools.partial(_pooler_end_logits_kernel, eps=layer_norm_eps,
                               ss_projected=ss_projected, has_mask=has_mask)

    out = pl.pallas_call(
        kernel,
        out_shape=jax.ShapeDtypeStruct((B, S_pad, 1), jnp.float32),
        grid=grid,
        in_specs=in_specs,
        out_specs=pl.BlockSpec((None, tm, 1), lambda b, i: (b, i, 0)),
        compiler_params=pltpu.CompilerParams(
            dimension_semantics=("parallel", "parallel"),
            vmem_limit_bytes=48 * 1024 * 1024),
    )(*inputs)

    return out[:, :S, 0]


def _init_raw_params(key, hidden_size):
    k0, k1, k2, k3 = jax.random.split(key, 4)
    H = hidden_size
    return {
        "dense_0_w": jax.random.normal(k0, (H, 2 * H), jnp.float32) * 0.02,
        "dense_0_b": jax.random.normal(k1, (H,), jnp.float32) * 0.02,
        "ln_gamma": jnp.ones((H,), jnp.float32),
        "ln_beta": jnp.zeros((H,), jnp.float32),
        "dense_1_w": jax.random.normal(k2, (1, H), jnp.float32) * 0.02,
        "dense_1_b": jax.random.normal(k3, (1,), jnp.float32) * 0.02,
    }


def _reference(hidden_states, raw, *, start_states=None, start_positions=None,
               p_mask=None, eps=1e-12):
    """Pure-JAX f32 reference matching the PyTorch module."""
    B, S, H = hidden_states.shape
    if start_positions is not None:
        idx = jnp.broadcast_to(
            start_positions.astype(jnp.int32)[:, None, None], (B, 1, H))
        start_states = jnp.take_along_axis(hidden_states, idx, axis=-2)
        start_states = jnp.broadcast_to(start_states, (B, S, H))
    cat = jnp.concatenate([hidden_states, start_states], axis=-1)
    x = jnp.tanh(cat @ raw["dense_0_w"].T + raw["dense_0_b"])
    mean = x.mean(-1, keepdims=True)
    var = ((x - mean) ** 2).mean(-1, keepdims=True)
    x = (x - mean) * jax.lax.rsqrt(var + eps) * raw["ln_gamma"] + raw["ln_beta"]
    x = (x @ raw["dense_1_w"].T + raw["dense_1_b"])[..., 0]
    if p_mask is not None:
        x = x * p_mask - 1e30 * (1.0 - p_mask)
    return x


if __name__ == "__main__":
    B, S, H = 2, 8, 32
    key = jax.random.PRNGKey(0)
    k_h, k_s, k_p, k_pm, k_params = jax.random.split(key, 5)

    hidden_states = jax.random.normal(k_h, (B, S, H), jnp.float32)
    start_states = jax.random.normal(k_s, (B, S, H), jnp.float32)
    start_positions = jax.random.randint(k_p, (B,), 0, S, jnp.int32)
    p_mask = (jax.random.uniform(k_pm, (B, S)) > 0.2).astype(jnp.float32)

    raw = _init_raw_params(k_params, H)
    params = prepare_params(raw)

    # Path 1: explicit start_states + p_mask (masked kernel variant)
    out1 = pooler_end_logits(hidden_states, params,
                             start_states=start_states, p_mask=p_mask)
    # Path 2: start_positions gather path, no mask (projected + unmasked variant)
    out2 = pooler_end_logits(hidden_states, params,
                             start_positions=start_positions)
    jax.block_until_ready((out1, out2))

    assert out1.shape == (B, S) and out2.shape == (B, S)

    ref1 = _reference(hidden_states, raw, start_states=start_states, p_mask=p_mask)
    ref2 = _reference(hidden_states, raw, start_positions=start_positions)
    # loose tolerance: kernel uses bf16 activations/weights on the MXU
    assert jnp.allclose(out1, ref1, atol=1e-1, rtol=1e-1)
    assert jnp.allclose(out2, ref2, atol=1e-1, rtol=1e-1)

    print("KERNEL_OK")
</pallas_src>

<mosaic_0001>
module attributes {stable_mosaic.version = 11 : i64} {
  func.func @_pooler_end_logits_kernel(%arg0: i32, %arg1: i32, %arg2: memref<1x8x32xbf16, #tpu.memory_space<vmem>>, %arg3: memref<1x8x32xbf16, #tpu.memory_space<vmem>>, %arg4: memref<32x32xbf16, #tpu.memory_space<vmem>>, %arg5: memref<32x32xbf16, #tpu.memory_space<vmem>>, %arg6: memref<1x32xf32, #tpu.memory_space<vmem>>, %arg7: memref<1x32xf32, #tpu.memory_space<vmem>>, %arg8: memref<1xf32, #tpu.memory_space<smem>>, %arg9: memref<1x8x1xf32, #tpu.memory_space<vmem>>, %arg10: memref<1x8x1xf32, #tpu.memory_space<vmem>>) attributes {dimension_semantics = [#tpu.dimension_semantics<parallel>, #tpu.dimension_semantics<parallel>], iteration_bounds = array<i64: 2, 1>, scalar_prefetch = 0 : i64, scratch_operands = 0 : i64, tpu.core_type = #tpu.core_type<tc>, window_params = [{transform_indices = @transform_0, window_bounds = array<i64: 1, 8, 32>}, {transform_indices = @transform_1, window_bounds = array<i64: 1, 8, 32>}, {pipeline_mode = #tpu.pipeline_mode<synchronous>, transform_indices = @transform_2, window_bounds = array<i64: 32, 32>}, {pipeline_mode = #tpu.pipeline_mode<synchronous>, transform_indices = @transform_3, window_bounds = array<i64: 32, 32>}, {pipeline_mode = #tpu.pipeline_mode<synchronous>, transform_indices = @transform_4, window_bounds = array<i64: 1, 32>}, {pipeline_mode = #tpu.pipeline_mode<synchronous>, transform_indices = @transform_5, window_bounds = array<i64: 1, 32>}, {transform_indices = @transform_6, window_bounds = array<i64: 1>}, {transform_indices = @transform_7, window_bounds = array<i64: 1, 8, 1>}, {transform_indices = @transform_8, window_bounds = array<i64: 1, 8, 1>}]} {
    %c0 = arith.constant 0 : index
    %c0_0 = arith.constant 0 : index
    %c0_1 = arith.constant 0 : index
    %0 = vector.load %arg2[%c0, %c0_0, %c0_1] : memref<1x8x32xbf16, #tpu.memory_space<vmem>>, vector<1x8x32xbf16>
    %1 = vector.shape_cast %0 : vector<1x8x32xbf16> to vector<8x32xbf16>
    %c0_2 = arith.constant 0 : index
    %c0_3 = arith.constant 0 : index
    %2 = vector.load %arg4[%c0_2, %c0_3] : memref<32x32xbf16, #tpu.memory_space<vmem>>, vector<32x32xbf16>
    %cst = arith.constant dense<0.000000e+00> : vector<8x32xf32>
    %3 = tpu.matmul %1, %2, %cst {dimension_numbers = #tpu.dot_dimension_numbers<[1], [0], [0], [1], [0, 0, 1, 1], [], []>} : vector<8x32xbf16>, vector<32x32xbf16>, vector<8x32xf32> -> vector<8x32xf32>
    %c0_4 = arith.constant 0 : index
    %c0_5 = arith.constant 0 : index
    %c0_6 = arith.constant 0 : index
    %4 = vector.load %arg3[%c0_4, %c0_5, %c0_6] : memref<1x8x32xbf16, #tpu.memory_space<vmem>>, vector<1x8x32xbf16>
    %5 = vector.shape_cast %4 : vector<1x8x32xbf16> to vector<8x32xbf16>
    %c0_7 = arith.constant 0 : index
    %c0_8 = arith.constant 0 : index
    %6 = vector.load %arg5[%c0_7, %c0_8] : memref<32x32xbf16, #tpu.memory_space<vmem>>, vector<32x32xbf16>
    %cst_9 = arith.constant dense<0.000000e+00> : vector<8x32xf32>
    %7 = tpu.matmul %5, %6, %cst_9 {dimension_numbers = #tpu.dot_dimension_numbers<[1], [0], [0], [1], [0, 0, 1, 1], [], []>} : vector<8x32xbf16>, vector<32x32xbf16>, vector<8x32xf32> -> vector<8x32xf32>
    %8 = arith.addf %3, %7 : vector<8x32xf32>
    %c0_10 = arith.constant 0 : index
    %c0_11 = arith.constant 0 : index
    %9 = vector.load %arg6[%c0_10, %c0_11] : memref<1x32xf32, #tpu.memory_space<vmem>>, vector<1x32xf32>
    %10 = vector.broadcast %9 : vector<1x32xf32> to vector<8x32xf32>
    %11 = arith.addf %8, %10 : vector<8x32xf32>
    %12 = math.tanh %11 : vector<8x32xf32>
    %cst_12 = arith.constant dense<0.000000e+00> : vector<8xf32>
    %13 = vector.multi_reduction <add>, %12, %cst_12 [1] : vector<8x32xf32> to vector<8xf32>
    %14 = vector.shape_cast %13 : vector<8xf32> to vector<8x1xf32>
    %cst_13 = arith.constant 3.200000e+01 : f32
    %15 = vector.broadcast %cst_13 : f32 to vector<8x1xf32>
    %16 = arith.divf %14, %15 : vector<8x1xf32>
    %17 = vector.broadcast %16 : vector<8x1xf32> to vector<8x32xf32>
    %18 = arith.subf %12, %17 : vector<8x32xf32>
    %19 = arith.mulf %18, %18 : vector<8x32xf32>
    %cst_14 = arith.constant dense<0.000000e+00> : vector<8xf32>
    %20 = vector.multi_reduction <add>, %19, %cst_14 [1] : vector<8x32xf32> to vector<8xf32>
    %21 = vector.shape_cast %20 : vector<8xf32> to vector<8x1xf32>
    %cst_15 = arith.constant 3.200000e+01 : f32
    %22 = vector.broadcast %cst_15 : f32 to vector<8x1xf32>
    %23 = arith.divf %21, %22 : vector<8x1xf32>
    %24 = vector.broadcast %16 : vector<8x1xf32> to vector<8x32xf32>
    %25 = arith.subf %12, %24 : vector<8x32xf32>
    %cst_16 = arith.constant 9.99999996E-13 : f32
    %26 = vector.broadcast %cst_16 : f32 to vector<8x1xf32>
    %27 = arith.addf %23, %26 : vector<8x1xf32>
    %28 = math.rsqrt %27 : vector<8x1xf32>
    %29 = vector.broadcast %28 : vector<8x1xf32> to vector<8x32xf32>
    %30 = arith.mulf %25, %29 : vector<8x32xf32>
    %c0_17 = arith.constant 0 : index
    %c0_18 = arith.constant 0 : index
    %31 = vector.load %arg7[%c0_17, %c0_18] : memref<1x32xf32, #tpu.memory_space<vmem>>, vector<1x32xf32>
    %32 = vector.broadcast %31 : vector<1x32xf32> to vector<8x32xf32>
    %33 = arith.mulf %30, %32 : vector<8x32xf32>
    %cst_19 = arith.constant dense<0.000000e+00> : vector<8xf32>
    %34 = vector.multi_reduction <add>, %33, %cst_19 [1] : vector<8x32xf32> to vector<8xf32>
    %35 = vector.shape_cast %34 : vector<8xf32> to vector<8x1xf32>
    %c0_20 = arith.constant 0 : index
    %36 = memref.load %arg8[%c0_20] : memref<1xf32, #tpu.memory_space<smem>>
    %37 = vector.broadcast %36 : f32 to vector<8x1xf32>
    %38 = arith.addf %35, %37 : vector<8x1xf32>
    %c0_21 = arith.constant 0 : index
    %c0_22 = arith.constant 0 : index
    %c0_23 = arith.constant 0 : index
    %39 = vector.load %arg9[%c0_21, %c0_22, %c0_23] : memref<1x8x1xf32, #tpu.memory_space<vmem>>, vector<1x8x1xf32>
    %40 = vector.shape_cast %39 : vector<1x8x1xf32> to vector<8x1xf32>
    %41 = arith.mulf %38, %40 : vector<8x1xf32>
    %cst_24 = arith.constant 1.000000e+00 : f32
    %42 = vector.broadcast %cst_24 : f32 to vector<8x1xf32>
    %43 = arith.subf %42, %40 : vector<8x1xf32>
    %cst_25 = arith.constant 1.000000e+30 : f32
    %44 = vector.broadcast %cst_25 : f32 to vector<8x1xf32>
    %45 = arith.mulf %44, %43 : vector<8x1xf32>
    %46 = arith.subf %41, %45 : vector<8x1xf32>
    %c0_26 = arith.constant 0 : index
    %c0_27 = arith.constant 0 : index
    %c0_28 = arith.constant 0 : index
    %47 = vector.load %arg10[%c0_26, %c0_27, %c0_28] : memref<1x8x1xf32, #tpu.memory_space<vmem>>, vector<1x8x1xf32>
    %48 = vector.shape_cast %47 : vector<1x8x1xf32> to vector<8x1xf32>
    %49 = vector.shape_cast %46 : vector<8x1xf32> to vector<1x8x1xf32>
    tpu.vector_store %arg10[%c0_26, %c0_27, %c0_28], %49 {strides = array<i32>} : memref<1x8x1xf32, #tpu.memory_space<vmem>>, vector<1x8x1xf32>,
    return
  }
  func.func @transform_0(%arg0: i32, %arg1: i32) -> (i32, i32, i32) {
    %c0_i32 = arith.constant 0 : i32
    %c0_i32_0 = arith.constant 0 : i32
    return %arg0, %arg1, %c0_i32 : i32, i32, i32
  }
  func.func @transform_1(%arg0: i32, %arg1: i32) -> (i32, i32, i32) {
    %c0_i32 = arith.constant 0 : i32
    %c0_i32_0 = arith.constant 0 : i32
    return %arg0, %arg1, %c0_i32 : i32, i32, i32
  }
  func.func @transform_2(%arg0: i32, %arg1: i32) -> (i32, i32) {
    %c0_i32 = arith.constant 0 : i32
    %c0_i32_0 = arith.constant 0 : i32
    %c0_i32_1 = arith.constant 0 : i32
    return %c0_i32, %c0_i32_0 : i32, i32
  }
  func.func @transform_3(%arg0: i32, %arg1: i32) -> (i32, i32) {
    %c0_i32 = arith.constant 0 : i32
    %c0_i32_0 = arith.constant 0 : i32
    %c0_i32_1 = arith.constant 0 : i32
    return %c0_i32, %c0_i32_0 : i32, i32
  }
  func.func @transform_4(%arg0: i32, %arg1: i32) -> (i32, i32) {
    %c0_i32 = arith.constant 0 : i32
    %c0_i32_0 = arith.constant 0 : i32
    %c0_i32_1 = arith.constant 0 : i32
    return %c0_i32, %c0_i32_0 : i32, i32
  }
  func.func @transform_5(%arg0: i32, %arg1: i32) -> (i32, i32) {
    %c0_i32 = arith.constant 0 : i32
    %c0_i32_0 = arith.constant 0 : i32
    %c0_i32_1 = arith.constant 0 : i32
    return %c0_i32, %c0_i32_0 : i32, i32
  }
  func.func @transform_6(%arg0: i32, %arg1: i32) -> i32 {
    %c0_i32 = arith.constant 0 : i32
    %c0_i32_0 = arith.constant 0 : i32
    return %c0_i32 : i32
  }
  func.func @transform_7(%arg0: i32, %arg1: i32) -> (i32, i32, i32) {
    %c0_i32 = arith.constant 0 : i32
    %c0_i32_0 = arith.constant 0 : i32
    return %arg0, %arg1, %c0_i32 : i32, i32, i32
  }
  func.func @transform_8(%arg0: i32, %arg1: i32) -> (i32, i32, i32) {
    %c0_i32 = arith.constant 0 : i32
    %c0_i32_0 = arith.constant 0 : i32
    return %arg0, %arg1, %c0_i32 : i32, i32, i32
  }
}

</mosaic_0001>

<llo_original>
// kernel: tpu_custom_call.1
$region0: #{tpu_custom_call.1}
  #allocation0 [shape = 'u32[]', space=smem, size = 0x4, offset = 0x4, fixed_abs, tag = 'smem constant byte address 0x4 - core index']
  #allocation1 [shape = 'u32[72,128]{1,0:T(1,128)}', space=vmem, size = 0x9000, scoped, tag = 'internal scratch']
  #allocation2 [shape = 'f32[1]{0:T(128)S(6)}', space=smem, size = 0x200, scoped, tag = 'scoped memory for tpu_custom_call.1']
  %s0 = inlined_call_operand.hbm [shape: bf16[2,8,32], index: 0, kind: input, shape index: {}]
  %s1 = inlined_call_operand.hbm [shape: bf16[2,8,32], index: 1, kind: input, shape index: {}]
  %s2 = inlined_call_operand.vmem [shape: bf16[32,32], index: 2, kind: input, shape index: {}]
  %s3 = inlined_call_operand.hbm [shape: bf16[32,32], index: 3, kind: input, shape index: {}]
  %s4 = inlined_call_operand.vmem [shape: f32[1,32], index: 4, kind: input, shape index: {}]
  %s5 = inlined_call_operand.vmem [shape: f32[1,32], index: 5, kind: input, shape index: {}]
  %s6 = inlined_call_operand.<no memory space> [shape: f32[1], index: 6, kind: input, shape index: {}]
  %s7 = inlined_call_operand.vmem [shape: f32[2,8,1], index: 7, kind: input, shape index: {}]
  %s8 = inlined_call_operand.vmem [shape: f32[2,8,1], index: 8, kind: output, shape index: {}]
  %s9 = sld [smem:[#allocation0]]
  $region77: #{tpu_custom_call.1} parent=0
    _
  %s11 = ssub.s32 1, %s9
  %s12 = scalar_select 0, %s11, %s9
  %13 = sst [smem:[#allocation2]] %s6
  $region1: #{tpu_custom_call.1} parent=0
    #allocation3 [shape = 'u8[4096]{0}', space=vmem, size = 0x1000, scoped, tag = 'input window, operand 0']
    #allocation4 [shape = 's32[2]{0}', space=sflag, size = 0x8, scoped, tag = 'scoped memory for tpu_custom_call.1']
    #allocation5 [shape = 'u8[4096]{0}', space=vmem, size = 0x1000, scoped, tag = 'input window, operand 1']
    #allocation6 [shape = 's32[2]{0}', space=sflag, size = 0x8, scoped, tag = 'scoped memory for tpu_custom_call.1']
    #allocation7 [shape = 'u8[8192]{0}', space=vmem, size = 0x2000, scoped, tag = 'input window, operand 3, single buffered']
    %14 = vsyncpa [#allocation4], 0
    %s15 = scalar_lea.sflag [#allocation4], 1
    %16 = vsyncpa %s15, 0
    %17 = vsyncpa [#allocation6], 0
    %s18 = scalar_lea.sflag [#allocation6], 1
    %19 = vsyncpa %s18, 0
    loop: start=0, step=1, limit=4
    $region2: #{tpu_custom_call.1} parent=1 // loop_pre_header
      _
    $region3: #{tpu_custom_call.1} parent=1 // loop_header
      %s21 = sphi 0, %s25
      %p22 = scmp.ge.s32.totalorder %s21, 4
      %s28 = sphi 0, %s40
      %s29 = sphi 0, %s36
      %s30 = sphi 0, %s28
      %s31 = sphi 0, %s29
      %s32 = sphi 0, %s30
      %s33 = sphi 0, %s31
      %s45 = sphi 0, %s47
      %s48 = sphi 0, %s45
      %s49 = sphi 0, %s48
      %s65 = sphi 0, %s49
      %s73 = sphi 0, %s75
      %s76 = sphi 0, %s73
      %s77 = sphi 0, %s76
      %s93 = sphi 0, %s77
      %s97 = sphi 0, %s97
      %s99 = sphi 0, %s97
      %s100 = sphi 0, %s99
      %s114 = sphi 0, %s100
      %s118 = sphi 0, %s118
      %s120 = sphi 0, %s118
      %s121 = sphi 0, %s120
      %s135 = sphi 0, %s121
      %s139 = sphi 0, %s139
      %s141 = sphi 0, %s139
      %s142 = sphi 0, %s141
      %s156 = sphi 0, %s142
      %s160 = sphi 0, %s160
      %s162 = sphi 0, %s160
      %s163 = sphi 0, %s162
      %s177 = sphi 0, %s163
      %s181 = sphi 0, %s181
      %s183 = sphi 0, %s181
      %s184 = sphi 0, %s183
      %s198 = sphi 0, %s184
      %s206 = sphi 0, %s208
      %s209 = sphi 0, %s206
      %s210 = sphi 0, %s209
      %s226 = sphi 0, %s210
      %s234 = sphi 0, %s236
      %s237 = sphi 0, %s234
      %s238 = sphi 0, %s237
      %s254 = sphi 0, %s238
    $region4: #{tpu_custom_call.1} parent=1 // loop_header_branch
      %24 = sbr.rel (%p22) target = $region8
    $region5: #{tpu_custom_call.1} parent=1 // loop_body
      %s26 = ssub.s32 %s21, 1
      %s27 = ssub.s32 %s21, 2
      %s34 = sadd.s32 1, %s29
      %p35 = scmp.ge.s32.totalorder %s34, 1
      %s36 = scalar_select %p35, 0, %s34
      %s37 = sadd.s32 1, %s28
      %s38 = scalar_select %p35, %s37, %s28
      %p39 = scmp.ge.s32.totalorder %s38, 2
      %s40 = scalar_select %p39, 0, %s38
      %s41 = ssub.s32 %s28, %s40
      %s42 = ssub.s32 %s29, %s36
      %s43 = sor.u32 %s41, %s42
      %p44 = scmp.eq.s32.totalorder %s43, 0
      %s46 = sadd.s32 %s45, 1
      %s47 = scalar_select %p44, %s45, %s46
      %p50 = pneg %p44
      %p51 = scmp.eq.s32.totalorder %s21, 1
      %p52 = por %p50, %p51
      %p53 = scmp.ne.s32.totalorder %s45, %s48
      %p54 = scmp.eq.s32.totalorder %s21, 0
      %p55 = por %p53, %p54
      %p56 = scmp.ne.s32.totalorder %s45, %s48
      %p57 = scmp.eq.s32.totalorder %s26, 1
      %p58 = por %p56, %p57
      %p59 = scmp.ne.s32.totalorder %s48, %s49
      %p60 = scmp.eq.s32.totalorder %s26, 0
      %p61 = por %p59, %p60
      %p62 = scmp.ne.s32.totalorder %s48, %s49
      %p63 = scmp.eq.s32.totalorder %s27, 1
      %p64 = por %p62, %p63
      %p66 = scmp.ne.s32.totalorder %s49, %s65
      %p67 = scmp.eq.s32.totalorder %s27, 0
      %p68 = por %p66, %p67
      %s69 = ssub.s32 %s28, %s40
      %s70 = ssub.s32 %s29, %s36
      %s71 = sor.u32 %s69, %s70
      %p72 = scmp.eq.s32.totalorder %s71, 0
      %s74 = sadd.s32 %s73, 1
      %s75 = scalar_select %p72, %s73, %s74
      %p78 = pneg %p72
      %p79 = scmp.eq.s32.totalorder %s21, 1
      %p80 = por %p78, %p79
      %p81 = scmp.ne.s32.totalorder %s73, %s76
      %p82 = scmp.eq.s32.totalorder %s21, 0
      %p83 = por %p81, %p82
      %p84 = scmp.ne.s32.totalorder %s73, %s76
      %p85 = scmp.eq.s32.totalorder %s26, 1
      %p86 = por %p84, %p85
      %p87 = scmp.ne.s32.totalorder %s76, %s77
      %p88 = scmp.eq.s32.totalorder %s26, 0
      %p89 = por %p87, %p88
      %p90 = scmp.ne.s32.totalorder %s76, %s77
      %p91 = scmp.eq.s32.totalorder %s27, 1
      %p92 = por %p90, %p91
      %p94 = scmp.ne.s32.totalorder %s77, %s93
      %p95 = scmp.eq.s32.totalorder %s27, 0
      %p96 = por %p94, %p95
      %s98 = sadd.s32 %s97, 1
      %p101 = scmp.eq.s32.totalorder %s21, 1
      %p102 = scmp.ne.s32.totalorder %s97, %s99
      %p103 = scmp.eq.s32.totalorder %s21, 0
      %p104 = por %p102, %p103
      %p105 = scmp.ne.s32.totalorder %s97, %s99
      %p106 = scmp.eq.s32.totalorder %s26, 1
      %p107 = por %p105, %p106
      %p108 = scmp.ne.s32.totalorder %s99, %s100
      %p109 = scmp.eq.s32.totalorder %s26, 0
      %p110 = por %p108, %p109
      %p111 = scmp.ne.s32.totalorder %s99, %s100
      %p112 = scmp.eq.s32.totalorder %s27, 1
      %p113 = por %p111, %p112
      %p115 = scmp.ne.s32.totalorder %s100, %s114
      %p116 = scmp.eq.s32.totalorder %s27, 0
      %p117 = por %p115, %p116
      %s119 = sadd.s32 %s118, 1
      %p122 = scmp.eq.s32.totalorder %s21, 1
      %p123 = scmp.ne.s32.totalorder %s118, %s120
      %p124 = scmp.eq.s32.totalorder %s21, 0
      %p125 = por %p123, %p124
      %p126 = scmp.ne.s32.totalorder %s118, %s120
      %p127 = scmp.eq.s32.totalorder %s26, 1
      %p128 = por %p126, %p127
      %p129 = scmp.ne.s32.totalorder %s120, %s121
      %p130 = scmp.eq.s32.totalorder %s26, 0
      %p131 = por %p129, %p130
      %p132 = scmp.ne.s32.totalorder %s120, %s121
      %p133 = scmp.eq.s32.totalorder %s27, 1
      %p134 = por %p132, %p133
      %p136 = scmp.ne.s32.totalorder %s121, %s135
      %p137 = scmp.eq.s32.totalorder %s27, 0
      %p138 = por %p136, %p137
      %s140 = sadd.s32 %s139, 1
      %p143 = scmp.eq.s32.totalorder %s21, 1
      %p144 = scmp.ne.s32.totalorder %s139, %s141
      %p145 = scmp.eq.s32.totalorder %s21, 0
      %p146 = por %p144, %p145
      %p147 = scmp.ne.s32.totalorder %s139, %s141
      %p148 = scmp.eq.s32.totalorder %s26, 1
      %p149 = por %p147, %p148
      %p150 = scmp.ne.s32.totalorder %s141, %s142
      %p151 = scmp.eq.s32.totalorder %s26, 0
      %p152 = por %p150, %p151
      %p153 = scmp.ne.s32.totalorder %s141, %s142
      %p154 = scmp.eq.s32.totalorder %s27, 1
      %p155 = por %p153, %p154
      %p157 = scmp.ne.s32.totalorder %s142, %s156
      %p158 = scmp.eq.s32.totalorder %s27, 0
      %p159 = por %p157, %p158
      %s161 = sadd.s32 %s160, 1
      %p164 = scmp.eq.s32.totalorder %s21, 1
      %p165 = scmp.ne.s32.totalorder %s160, %s162
      %p166 = scmp.eq.s32.totalorder %s21, 0
      %p167 = por %p165, %p166
      %p168 = scmp.ne.s32.totalorder %s160, %s162
      %p169 = scmp.eq.s32.totalorder %s26, 1
      %p170 = por %p168, %p169
      %p171 = scmp.ne.s32.totalorder %s162, %s163
      %p172 = scmp.eq.s32.totalorder %s26, 0
      %p173 = por %p171, %p172
      %p174 = scmp.ne.s32.totalorder %s162, %s163
      %p175 = scmp.eq.s32.totalorder %s27, 1
      %p176 = por %p174, %p175
      %p178 = scmp.ne.s32.totalorder %s163, %s177
      %p179 = scmp.eq.s32.totalorder %s27, 0
      %p180 = por %p178, %p179
      %s182 = sadd.s32 %s181, 1
      %p185 = scmp.eq.s32.totalorder %s21, 1
      %p186 = scmp.ne.s32.totalorder %s181, %s183
      %p187 = scmp.eq.s32.totalorder %s21, 0
      %p188 = por %p186, %p187
      %p189 = scmp.ne.s32.totalorder %s181, %s183
      %p190 = scmp.eq.s32.totalorder %s26, 1
      %p191 = por %p189, %p190
      %p192 = scmp.ne.s32.totalorder %s183, %s184
      %p193 = scmp.eq.s32.totalorder %s26, 0
      %p194 = por %p192, %p193
      %p195 = scmp.ne.s32.totalorder %s183, %s184
      %p196 = scmp.eq.s32.totalorder %s27, 1
      %p197 = por %p195, %p196
      %p199 = scmp.ne.s32.totalorder %s184, %s198
      %p200 = scmp.eq.s32.totalorder %s27, 0
      %p201 = por %p199, %p200
      %s202 = ssub.s32 %s28, %s40
      %s203 = ssub.s32 %s29, %s36
      %s204 = sor.u32 %s202, %s203
      %p205 = scmp.eq.s32.totalorder %s204, 0
      %s207 = sadd.s32 %s206, 1
      %s208 = scalar_select %p205, %s206, %s207
      %p211 = pneg %p205
      %p212 = scmp.eq.s32.totalorder %s21, 1
      %p213 = por %p211, %p212
      %p214 = scmp.ne.s32.totalorder %s206, %s209
      %p215 = scmp.eq.s32.totalorder %s21, 0
      %p216 = por %p214, %p215
      %p217 = scmp.ne.s32.totalorder %s206, %s209
      %p218 = scmp.eq.s32.totalorder %s26, 1
      %p219 = por %p217, %p218
      %p220 = scmp.ne.s32.totalorder %s209, %s210
      %p221 = scmp.eq.s32.totalorder %s26, 0
      %p222 = por %p220, %p221
      %p223 = scmp.ne.s32.totalorder %s209, %s210
      %p224 = scmp.eq.s32.totalorder %s27, 1
      %p225 = por %p223, %p224
      %p227 = scmp.ne.s32.totalorder %s210, %s226
      %p228 = scmp.eq.s32.totalorder %s27, 0
      %p229 = por %p227, %p228
      %s230 = ssub.s32 %s28, %s40
      %s231 = ssub.s32 %s29, %s36
      %s232 = sor.u32 %s230, %s231
      %p233 = scmp.eq.s32.totalorder %s232, 0
      %s235 = sadd.s32 %s234, 1
      %s236 = scalar_select %p233, %s234, %s235
      %p239 = pneg %p233
      %p240 = scmp.eq.s32.totalorder %s21, 1
      %p241 = por %p239, %p240
      %p242 = scmp.ne.s32.totalorder %s234, %s237
      %p243 = scmp.eq.s32.totalorder %s21, 0
      %p244 = por %p242, %p243
      %p245 = scmp.ne.s32.totalorder %s234, %s237
      %p246 = scmp.eq.s32.totalorder %s26, 1
      %p247 = por %p245, %p246
      %p248 = scmp.ne.s32.totalorder %s237, %s238
      %p249 = scmp.eq.s32.totalorder %s26, 0
      %p250 = por %p248, %p249
      %p251 = scmp.ne.s32.totalorder %s237, %s238
      %p252 = scmp.eq.s32.totalorder %s27, 1
      %p253 = por %p251, %p252
      %p255 = scmp.ne.s32.totalorder %s238, %s254
      %p256 = scmp.eq.s32.totalorder %s27, 0
      %p257 = por %p255, %p256
      %p258 = scmp.le.s32.totalorder 1, %s21
      %p259 = scmp.lt.s32.totalorder %s21, 3
      %p260 = pnand %p258, %p259
      %p261 = pneg %p260
      // Predicated region
      $region9: #{tpu_custom_call.1} parent=5 // pred_check
        _
      $region10: #{tpu_custom_call.1} parent=5 // pred_check_branch
        %263 = sbr.rel (%p260) target = $region12
      $region11: #{tpu_custom_call.1} parent=5 // pred_region
        %s264 = ssub.s32 %s21, 1
        // Predicated region
        $region13: #{tpu_custom_call.1} parent=11 // pred_check
          %p265 = pneg %p110
        $region14: #{tpu_custom_call.1} parent=11 // pred_check_branch
          %267 = sbr.rel (%p265) target = $region16
        $region15: #{tpu_custom_call.1} parent=11 // pred_region
          _
        $region16: #{tpu_custom_call.1} parent=11 // pred_fallthru
          _
        // Predicated region
        $region17: #{tpu_custom_call.1} parent=11 // pred_check
          %p268 = pneg %p131
        $region18: #{tpu_custom_call.1} parent=11 // pred_check_branch
          %270 = sbr.rel (%p268) target = $region20
        $region19: #{tpu_custom_call.1} parent=11 // pred_region
          %272 = vsyncadd [#allocation6], 0
          %s273 = sshll.u32 %s3, 4
          %s274 = int_to_ptr.hbm [resolvable:$true] %s273
          %s275 = sshll.u32 [#allocation7], 4
          %s276 = int_to_ptr.vmem [resolvable:$true] %s275
          %281 = dma.hbm_to_vmem [thread:$0]  %s274, 256, %s276, [#allocation6], 64, 64, 4
        $region20: #{tpu_custom_call.1} parent=11 // pred_fallthru
          _
        // Predicated region
        $region21: #{tpu_custom_call.1} parent=11 // pred_check
          %p282 = pneg %p152
        $region22: #{tpu_custom_call.1} parent=11 // pred_check_branch
          %284 = sbr.rel (%p282) target = $region24
        $region23: #{tpu_custom_call.1} parent=11 // pred_region
          _
        $region24: #{tpu_custom_call.1} parent=11 // pred_fallthru
          _
        // Predicated region
        $region25: #{tpu_custom_call.1} parent=11 // pred_check
          %p285 = pneg %p173
        $region26: #{tpu_custom_call.1} parent=11 // pred_check_branch
          %287 = sbr.rel (%p285) target = $region28
        $region27: #{tpu_custom_call.1} parent=11 // pred_region
          _
        $region28: #{tpu_custom_call.1} parent=11 // pred_fallthru
          _
        // Predicated region
        $region29: #{tpu_custom_call.1} parent=11 // pred_check
          %p288 = pneg %p194
        $region30: #{tpu_custom_call.1} parent=11 // pred_check_branch
          %290 = sbr.rel (%p288) target = $region32
        $region31: #{tpu_custom_call.1} parent=11 // pred_region
          _
        $region32: #{tpu_custom_call.1} parent=11 // pred_fallthru
          _
      $region12: #{tpu_custom_call.1} parent=5 // pred_fallthru
        _
      %p291 = scmp.lt.s32.totalorder %s21, 2
      // Predicated region
      $region33: #{tpu_custom_call.1} parent=5 // pred_check
        %p292 = pneg %p291
      $region34: #{tpu_custom_call.1} parent=5 // pred_check_branch
        %294 = sbr.rel (%p292) target = $region36
      $region35: #{tpu_custom_call.1} parent=5 // pred_region
        // Predicated region
        $region37: #{tpu_custom_call.1} parent=35 // pred_check
          %p295 = pneg %p55
        $region38: #{tpu_custom_call.1} parent=35 // pred_check_branch
          %297 = sbr.rel (%p295) target = $region40
        $region39: #{tpu_custom_call.1} parent=35 // pred_region
          %s298 = sand.u32 %s45, 1
          %s299 = scalar_lea.sflag [#allocation4], %s298
          %s300 = sand.u32 %s45, 1
          %s301 = smul.addr %s300, 4
          %s302 = scalar_lea.vmem [#allocation3], %s301
          %304 = vsyncadd %s299, 0
          %s305 = sadd.s32 %s29, %s28
          %s306 = smul.addr %s305, 4
          %s307 = scalar_lea.hbm %s0, %s306
          %s309 = sshll.u32 %s307, 4
          %s310 = int_to_ptr.hbm [resolvable:$true] %s309
          %s311 = sshll.u32 %s302, 4
          %s312 = int_to_ptr.vmem [resolvable:$true] %s311
          %314 = dma.hbm_to_vmem [thread:$0]  %s310, 64, %s312, %s299
        $region40: #{tpu_custom_call.1} parent=35 // pred_fallthru
          _
        // Predicated region
        $region41: #{tpu_custom_call.1} parent=35 // pred_check
          %p315 = pneg %p83
        $region42: #{tpu_custom_call.1} parent=35 // pred_check_branch
          %317 = sbr.rel (%p315) target = $region44
        $region43: #{tpu_custom_call.1} parent=35 // pred_region
          %s318 = sand.u32 %s21, 1
          %s319 = scalar_lea.sflag [#allocation6], %s318
          %s320 = sand.u32 %s73, 1
          %s321 = smul.addr %s320, 4
          %s322 = scalar_lea.vmem [#allocation5], %s321
          %324 = vsyncadd %s319, 0
          %s325 = sadd.s32 %s29, %s28
          %s326 = smul.addr %s325, 4
          %s327 = scalar_lea.hbm %s1, %s326
          %s329 = sshll.u32 %s327, 4
          %s330 = int_to_ptr.hbm [resolvable:$true] %s329
          %s331 = sshll.u32 %s322, 4
          %s332 = int_to_ptr.vmem [resolvable:$true] %s331
          %334 = dma.hbm_to_vmem [thread:$0]  %s330, 64, %s332, %s319
        $region44: #{tpu_custom_call.1} parent=35 // pred_fallthru
          _
        // Predicated region
        $region45: #{tpu_custom_call.1} parent=35 // pred_check
          %p335 = pneg %p216
        $region46: #{tpu_custom_call.1} parent=35 // pred_check_branch
          %337 = sbr.rel (%p335) target = $region48
        $region47: #{tpu_custom_call.1} parent=35 // pred_region
          %p338 = scmp.lt.s32.totalorder %s28, 1
          %s339 = scalar_select %p338, %s28, 1
          %p340 = scmp.lt.s32.totalorder %s29, 0
          %s341 = scalar_select %p340, %s29, 0
          %s342 = sadd.s32 %s341, %s339
          %s343 = smul.addr %s342, 8
          %s344 = scalar_lea.vmem %s7, %s343
        $region48: #{tpu_custom_call.1} parent=35 // pred_fallthru
          _
      $region36: #{tpu_custom_call.1} parent=5 // pred_fallthru
        _
      %p345 = scmp.le.s32.totalorder 1, %s21
      %p346 = scmp.lt.s32.totalorder %s21, 3
      %p347 = pnand %p345, %p346
      %p348 = pneg %p347
      // Predicated region
      $region49: #{tpu_custom_call.1} parent=5 // pred_check
        _
      $region50: #{tpu_custom_call.1} parent=5 // pred_check_branch
        %350 = sbr.rel (%p347) target = $region52
      $region51: #{tpu_custom_call.1} parent=5 // pred_region
        %s351 = ssub.s32 %s21, 1
        %s352 = sand.u32 %s48, 1
        %s353 = scalar_lea.sflag [#allocation4], %s352
        %s354 = sand.u32 %s48, 1
        %s355 = smul.addr %s354, 4
        %s356 = scalar_lea.vmem [#allocation3], %s355
        // Predicated region
        $region53: #{tpu_custom_call.1} parent=51 // pred_check
          %p357 = pneg %p61
        $region54: #{tpu_custom_call.1} parent=51 // pred_check_branch
          %359 = sbr.rel (%p357) target = $region56
        $region55: #{tpu_custom_call.1} parent=51 // pred_region
          %361 = dma.done %s353, 64
        $region56: #{tpu_custom_call.1} parent=51 // pred_fallthru
          _
        %s362 = sand.u32 %s26, 1
        %s363 = scalar_lea.sflag [#allocation6], %s362
        %s364 = sand.u32 %s76, 1
        %s365 = smul.addr %s364, 4
        %s366 = scalar_lea.vmem [#allocation5], %s365
        // Predicated region
        $region57: #{tpu_custom_call.1} parent=51 // pred_check
          %p367 = pneg %p89
        $region58: #{tpu_custom_call.1} parent=51 // pred_check_branch
          %369 = sbr.rel (%p367) target = $region60
        $region59: #{tpu_custom_call.1} parent=51 // pred_region
          %371 = dma.done %s363, 64
        $region60: #{tpu_custom_call.1} parent=51 // pred_fallthru
          _
        // Predicated region
        $region61: #{tpu_custom_call.1} parent=51 // pred_check
          %p372 = pneg %p131
        $region62: #{tpu_custom_call.1} parent=51 // pred_check_branch
          %374 = sbr.rel (%p372) target = $region64
        $region63: #{tpu_custom_call.1} parent=51 // pred_region
          %376 = dma.done [#allocation6], 256
        $region64: #{tpu_custom_call.1} parent=51 // pred_fallthru
          _
        %s377 = sand.u32 %s48, 1
        %s378 = scalar_lea.sflag [#allocation4], %s377
        %s379 = sand.u32 %s48, 1
        %s380 = smul.addr %s379, 4
        %s381 = scalar_lea.vmem [#allocation3], %s380
        %p382 = pneg %p61
        %p383 = pneg %p58
        %s384 = sand.u32 %s26, 1
        %s385 = scalar_lea.sflag [#allocation6], %s384
        %s386 = sand.u32 %s76, 1
        %s387 = smul.addr %s386, 4
        %s388 = scalar_lea.vmem [#allocation5], %s387
        %p389 = pneg %p89
        %p390 = pneg %p86
        %p391 = pneg %p110
        %p392 = pneg %p107
        %p393 = pneg %p131
        %p394 = pneg %p128
        %p395 = pneg %p152
        %p396 = pneg %p149
        %p397 = pneg %p173
        %p398 = pneg %p170
        %p399 = pneg %p194
        %p400 = pneg %p191
        %p401 = scmp.lt.s32.totalorder %s30, 1
        %s402 = scalar_select %p401, %s30, 1
        %p403 = scmp.lt.s32.totalorder %s31, 0
        %s404 = scalar_select %p403, %s31, 0
        %s405 = sadd.s32 %s404, %s402
        %s406 = smul.addr %s405, 8
        %s407 = scalar_lea.vmem %s7, %s406
        %p408 = pneg %p222
        %p409 = pneg %p219
        %p410 = pneg %p250
        %p411 = pneg %p247
        %p412 = scmp.lt.s32.totalorder %s30, 1
        %s413 = scalar_select %p412, %s30, 1
        %p414 = scmp.lt.s32.totalorder %s31, 0
        %s415 = scalar_select %p414, %s31, 0
        %s416 = sadd.s32 %s415, %s413
        %s417 = smul.addr %s416, 8
        %s418 = scalar_lea.vmem %s8, %s417
        %p419 = scmp.lt.s32.totalorder %s30, 1
        %s420 = scalar_select %p419, %s30, 1
        %p421 = scmp.lt.s32.totalorder %s31, 0
        %s422 = scalar_select %p421, %s31, 0
        %s423 = sadd.s32 %s422, %s420
        %s424 = smul.addr %s423, 8
        %s425 = scalar_lea.vmem %s7, %s424
        %p426 = scmp.lt.s32.totalorder %s30, 1
        %s427 = scalar_select %p426, %s30, 1
        %p428 = scmp.lt.s32.totalorder %s31, 0
        %s429 = scalar_select %p428, %s31, 0
        %s430 = sadd.s32 %s429, %s427
        %s431 = smul.addr %s430, 8
        %s432 = scalar_lea.vmem %s8, %s431
        %v434 = vld [vmem:[%s356] sm:$0xf]
        %v435 = vld [vmem:[%s2] sm:$0xf]
        %v436 = vld [vmem:[%s2 + $0x4] sm:$0xf]
        %v437 = vld [vmem:[%s2 + $0x8] sm:$0xf]
        %v438 = vld [vmem:[%s2 + $0xc] sm:$0xf]
        %v439 = vld [vmem:[%s366] sm:$0xf]
        %v440 = vld [vmem:[#allocation7] sm:$0xf]
        %v441 = vld [vmem:[#allocation7 + $0x4] sm:$0xf]
        %v442 = vld [vmem:[#allocation7 + $0x8] sm:$0xf]
        %v443 = vld [vmem:[#allocation7 + $0xc] sm:$0xf]
        %v448 = vunpack.c.l.b16 %v440
        %v449 = vunpack.c.l.b16 %v441
        %v450 = vunpack.c.l.b16 %v442
        %v451 = vunpack.c.l.b16 %v443
        %v452 = vpack.c.b16 %v449, %v448
        %v453 = vpack.c.b16 %v451, %v450
        %vm456 = vcmask 261120
        %v458 = vsel %vm456, %v439, 0
        %460 = vmatpush.bf16.msra.mxu0 0
        %461 = vmatpush.bf16.msra.mxu0 0
        %462 = vmatpush.bf16.msra.mxu0 0
        %463 = vmatpush.bf16.msra.mxu0 0
        %464 = vmatpush.bf16.msra.mxu0 0
        %465 = vmatpush.bf16.msra.mxu0 0
        %466 = vmatpush.bf16.msra.mxu0 %v453
        %467 = vmatpush.bf16.msra.mxu0 %v452
        %468 = vmatmul.bf16.gmra.mxu0 %v458
        %v469 = vpop.f32.mrf.mxu0
        %v470 = vadd.f32 0.0, %v469
        %v471 = vpop.f32.mrf.mxu0
        %472 = vdwg.mxu0
        %v477 = vunpack.c.l.b16 %v435
        %v478 = vunpack.c.l.b16 %v436
        %v479 = vunpack.c.l.b16 %v437
        %v480 = vunpack.c.l.b16 %v438
        %v481 = vpack.c.b16 %v478, %v477
        %v482 = vpack.c.b16 %v480, %v479
        %v486 = vsel %vm456, %v434, 0
        %488 = vmatpush.bf16.msra.mxu0 0
        %489 = vmatpush.bf16.msra.mxu0 0
        %490 = vmatpush.bf16.msra.mxu0 0
        %491 = vmatpush.bf16.msra.mxu0 0
        %492 = vmatpush.bf16.msra.mxu0 0
        %493 = vmatpush.bf16.msra.mxu0 0
        %494 = vmatpush.bf16.msra.mxu0 %v482
        %495 = vmatpush.bf16.msra.mxu0 %v481
        %496 = vmatmul.bf16.gmra.mxu0 %v486
        %v497 = vpop.f32.mrf.mxu0
        %v498 = vadd.f32 %v470, %v497
        %v499 = vpop.f32.mrf.mxu0
        %500 = vdwg.mxu0
        %v501 = vld [vmem:[%s4] sm:$0x1]
        %v503 = vperm.slane %v501, 0
        %v505 = vadd.f32 %v498, %v503
        %v506 = vtanh.pop %v505
        %v507 = vsel %vm456, %v506, 0.0
        %508 = vadd.xlane.f32.xlu0 %v507
        %v509 = vpop.xlane.xlu0 %508
        %v510 = vrcp.pop 32.0
        %v511 = vmul.f32 32.0, %v510
        %v512 = vsub.f32 1.0, %v511
        %v513 = vmul.f32 %v510, %v512
        %v514 = vadd.f32 %v510, %v513
        %vm515 = vweird.f32 %v510
        %v516 = vsel %vm515, %v510, %v514
        %v517 = vmul.f32 %v509, %v516
        %v518 = vsub.f32 %v506, %v517
        %v519 = vmul.f32 %v518, %v518
        %v520 = vsel %vm456, %v519, 0.0
        %521 = vadd.xlane.f32.xlu0 %v520
        %v522 = vpop.xlane.xlu0 %521
        %v523 = vmul.f32 %v522, %v516
        %v524 = vadd.f32 %v523, 1e-12
        %v525 = vrsqrt.pop %v524
        %v526 = vmul.f32 %v525, %v524
        %v527 = vmul.f32 %v526, %v525
        %v528 = vmul.f32 0.5, %v527
        %v529 = vsub.f32 1.5, %v528
        %v530 = vmul.f32 %v525, %v529
        %vm531 = vweird.f32 %v524
        %vm532 = vweird.f32 %v525
        %vm533 = vmor %vm531, %vm532
        %v534 = vsel %vm533, %v525, %v530
        %v535 = vmul.f32 %v518, %v534
        %v536 = vld [vmem:[%s5] sm:$0x1]
        %v538 = vperm.slane %v536, 0
        %v540 = vmul.f32 %v535, %v538
        %v541 = vsel %vm456, %v540, 0.0
        %542 = vadd.xlane.f32.xlu0 %v541
        %v543 = vpop.xlane.xlu0 %542
        %s544 = sld [smem:[#allocation2]]
        %v545 = vstv %s544
        %v546 = vadd.f32 %v543, %v545
        %v547 = vld [vmem:[%s425] sm:$0xff]
        %v548 = vmul.f32 %v546, %v547
        %v549 = vsub.f32 1.0, %v547
        %v550 = vmul.f32 %v549, 1e+30
        %v551 = vsub.f32 %v548, %v550
        %vm552 = vcmask 7168
        %553 = vst.msk [vmem:[%s432] sm:$0xff] %vm552, %v551
        %p554 = scmp.lt.s32.totalorder %s30, 1
        %s555 = scalar_select %p554, %s30, 1
        %p556 = scmp.lt.s32.totalorder %s31, 0
        %s557 = scalar_select %p556, %s31, 0
        %s558 = sadd.s32 %s557, %s555
        %s559 = smul.addr %s558, 8
        %s560 = scalar_lea.vmem %s8, %s559
        // Predicated region
        $region65: #{tpu_custom_call.1} parent=51 // pred_check
          %p561 = pneg %p247
        $region66: #{tpu_custom_call.1} parent=51 // pred_check_branch
          %563 = sbr.rel (%p561) target = $region68
        $region67: #{tpu_custom_call.1} parent=51 // pred_region
          _
        $region68: #{tpu_custom_call.1} parent=51 // pred_fallthru
          _
      $region52: #{tpu_custom_call.1} parent=5 // pred_fallthru
        _
      %p564 = scmp.le.s32.totalorder 2, %s21
      // Predicated region
      $region69: #{tpu_custom_call.1} parent=5 // pred_check
        %p565 = pneg %p564
      $region70: #{tpu_custom_call.1} parent=5 // pred_check_branch
        %567 = sbr.rel (%p565) target = $region72
      $region71: #{tpu_custom_call.1} parent=5 // pred_region
        %s568 = ssub.s32 %s21, 2
        // Predicated region
        $region73: #{tpu_custom_call.1} parent=71 // pred_check
          %p569 = pneg %p253
        $region74: #{tpu_custom_call.1} parent=71 // pred_check_branch
          %571 = sbr.rel (%p569) target = $region76
        $region75: #{tpu_custom_call.1} parent=71 // pred_region
          %p572 = scmp.lt.s32.totalorder %s32, 1
          %s573 = scalar_select %p572, %s32, 1
          %p574 = scmp.lt.s32.totalorder %s33, 0
          %s575 = scalar_select %p574, %s33, 0
          %s576 = sadd.s32 %s575, %s573
          %s577 = smul.addr %s576, 8
          %s578 = scalar_lea.vmem %s8, %s577
        $region76: #{tpu_custom_call.1} parent=71 // pred_fallthru
          _
      $region72: #{tpu_custom_call.1} parent=5 // pred_fallthru
        _
    $region6: #{tpu_custom_call.1} parent=1 // loop_footer
      %s25 = sadd.s32 1, %s21
    $region7: #{tpu_custom_call.1} parent=1 // loop_footer_branch
      %20 = sbr.rel target = $region3
    $region8: #{tpu_custom_call.1} parent=1 // loop_exit
      _
    %579 = vsyncpa [#allocation4], 1
    %s580 = scalar_lea.sflag [#allocation4], 1
    %581 = vsyncpa %s580, 1
    %582 = vsyncpa [#allocation6], 1
    %s583 = scalar_lea.sflag [#allocation6], 1
    %584 = vsyncpa %s583, 1

</llo_original>
